<compile_context>
chip_gen: v7x
topology: tpu7x:2x2x1
jax: 0.10.0
libtpu: 0.0.40
codegen_flags: <defaults>
</compile_context>

<pallas_src>
import jax
import jax.numpy as jnp
from jax import lax
from jax.experimental import pallas as pl
from jax.experimental.pallas import tpu as pltpu


def _round_up(x: int, m: int) -> int:
    return ((x + m - 1) // m) * m


def _pick_score_tile(S: int, block_q: int, H: int, budget_bytes: int = 2 << 20) -> int:
    """Largest divisor of S whose (block_q, tile_s, H) f32 tanh temp fits the budget."""
    max_tile = max(1, budget_bytes // max(1, block_q * H * 4))
    t = min(S, max_tile)
    while S % t:
        t -= 1
    return t


def _make_attention_kernel(tile_s: int, n_tiles: int):
    """Kernel for fixed (tile_s, n_tiles); block_q / S / H come from the ref shapes."""

    def kernel(u_ref, w_ref, wv_ref, h_ref, ctx_ref, e_ref):
        # u_ref  : (block_q, H) f32   precomputed s @ Wu.T (blocked over the grid)
        # w_ref  : (S, H)      f32   precomputed h @ Ww.T (resident, query-invariant)
        # wv_ref : (1, H)      f32   vA weight row (resident)
        # h_ref  : (S, H)      native encoder outputs (resident)
        # ctx_ref: (block_q, H)       context output block
        # e_ref  : (block_q, S) f32  lane-major score scratch
        u = u_ref[...]                                   # (bq, H) f32
        wv3 = wv_ref[...][None, :, :]                    # (1, 1, H) f32

        def score_tile(t):
            # Batched score tile: tanh for ALL block_q queries at once (EUP),
            # contraction with vA via VPU mul + lane reduce (XLU) so it
            # co-issues with the tanh; lane-dense (block_q, tile_s) slab store.
            if isinstance(t, int):
                start = t * tile_s
            else:
                start = pl.multiple_of(t * tile_s, tile_s)
            w_t = w_ref[pl.ds(start, tile_s), :]                       # (ts, H) f32
            tmp = jnp.tanh(u[:, None, :] + w_t[None, :, :])            # (bq, ts, H)
            e_t = jnp.sum(tmp * wv3, axis=-1)                          # (bq, ts)
            e_ref[:, pl.ds(start, tile_s)] = e_t

        if n_tiles == 1:
            score_tile(0)
        else:
            def body(t, carry):
                score_tile(t)
                return carry
            lax.fori_loop(0, n_tiles, body, 0, unroll=(n_tiles <= 8))

        # Softmax along the lane (sequence) axis on the whole (block_q, S) block.
        # Exact division (not approx reciprocal) to match the f32 reference.
        e = e_ref[...]
        m = jnp.max(e, axis=-1, keepdims=True)
        p = jnp.exp(e - m)
        alphas = p / jnp.sum(p, axis=-1, keepdims=True)                # (bq, S) f32

        # Context: one MXU matmul in h's native dtype (no f32 copy of h).
        h = h_ref[...]
        ctx = jnp.dot(alphas.astype(h.dtype), h,
                      preferred_element_type=jnp.float32)              # (bq, H) f32
        ctx_ref[...] = ctx.astype(ctx_ref.dtype)

    return kernel


def prepare_attention_params(params):
    """Hoists the weight transposes out of the per-step call (do this ONCE)."""
    return {
        "wu_t": jnp.asarray(params["uA"]).T,                       # (H, H)
        "ww_t": jnp.asarray(params["wA"]).T,                       # (H, H)
        "wv": jnp.asarray(params["vA"]).astype(jnp.float32),       # (1, H)
    }


def precompute_encoder_projection(encoder_outputs, prepared):
    """w_ = h @ Ww.T  -- query-invariant: compute ONCE per encoded sequence (XLA GEMM)."""
    return jnp.dot(encoder_outputs, prepared["ww_t"],
                   preferred_element_type=jnp.float32)             # (S, H) f32


def batched_attention_context(s_rows, encoder_outputs, prepared, *,
                              w_enc=None, block_q=None):
    """Context vectors for a batch of independent query rows.

    s_rows          : (B, H) decoder hidden states (decode steps / beam rows)
    encoder_outputs : (S, H)
    prepared        : output of prepare_attention_params (built once)
    w_enc           : optional precomputed encoder projection (S, H) f32
    Returns (B, H) context vectors.
    """
    B, H = s_rows.shape
    S, _ = encoder_outputs.shape
    out_dtype = encoder_outputs.dtype

    if w_enc is None:
        w_enc = precompute_encoder_projection(encoder_outputs, prepared)

    # u_ = s @ Wu.T as a plain XLA GEMM outside the kernel (drops the (H, H)
    # weight from the kernel's VMEM working set entirely).
    u_rows = jnp.dot(s_rows, prepared["wu_t"],
                     preferred_element_type=jnp.float32)           # (B, H) f32

    # Query-block sizing: small B -> single grid step (padded, multiple of 16 so
    # bf16 inputs also satisfy the (16,128) min-tile); large B -> 128-row MXU tiles.
    if block_q is None:
        block_q = _round_up(B, 16) if B <= 128 else 128
    else:
        block_q = _round_up(block_q, 16)
    n_blocks = pl.cdiv(B, block_q)
    b_pad = n_blocks * block_q
    if b_pad != B:
        u_rows = jnp.pad(u_rows, ((0, b_pad - B), (0, 0)))

    tile_s = _pick_score_tile(S, block_q, H)
    n_tiles = S // tile_s

    h_bytes = encoder_outputs.dtype.itemsize
    out_bytes = jnp.dtype(out_dtype).itemsize

    # Kernel-only cost (projections now live outside the call).
    cost = pl.CostEstimate(
        flops=4 * b_pad * S * H + 5 * b_pad * S,          # score contraction + context + softmax
        transcendentals=b_pad * S * H + b_pad * S,        # tanh + exp
        bytes_accessed=(b_pad * H * 4                     # u_
                        + S * H * 4                       # w_enc (f32)
                        + H * 4                           # wv
                        + S * H * h_bytes                 # encoder outputs
                        + b_pad * H * out_bytes),         # context out
    )

    # Explicit scoped-VMEM budget (v5e defaults to 16 MiB): resident set +
    # double-buffered streamed blocks + scratch/tanh temporary, with headroom.
    resident_bytes = S * H * 4 + S * H * h_bytes + H * 4
    stream_bytes = 2 * block_q * H * (4 + out_bytes)
    scratch_bytes = block_q * S * 4 + block_q * tile_s * H * 4
    vmem_limit = int(min(96 << 20,
                         max(2 * (resident_bytes + stream_bytes + scratch_bytes) + (4 << 20),
                             16 << 20)))

    ctx = pl.pallas_call(
        _make_attention_kernel(tile_s, n_tiles),
        out_shape=jax.ShapeDtypeStruct((b_pad, H), out_dtype),
        grid_spec=pltpu.PrefetchScalarGridSpec(
            num_scalar_prefetch=0,
            grid=(n_blocks,),
            in_specs=[
                pl.BlockSpec((block_q, H), lambda i: (i, 0)),   # u_: blocked over queries
                pl.BlockSpec((S, H), lambda i: (0, 0)),         # w_enc: resident
                pl.BlockSpec((1, H), lambda i: (0, 0)),         # wv:    resident
                pl.BlockSpec((S, H), lambda i: (0, 0)),         # h:     resident
            ],
            out_specs=pl.BlockSpec((block_q, H), lambda i: (i, 0)),
            scratch_shapes=[pltpu.VMEM((block_q, S), jnp.float32)],
        ),
        compiler_params=pltpu.CompilerParams(
            # Query blocks are fully independent -> shard across v7x's 2 TCs.
            dimension_semantics=("parallel",),
            vmem_limit_bytes=vmem_limit,
        ),
        cost_estimate=cost,
    )(u_rows, w_enc, prepared["wv"], encoder_outputs)
    return ctx[:B]


def attention_forward(prev_decoder_hidden, encoder_outputs, prepared, *,
                      w_enc=None, block_q=None):
    """Faithful Attention.forward (return_attention=False) on the Pallas kernel.

    prev_decoder_hidden : tuple (h_state, c_state); h_state shape (num_layers, 1, H)
    encoder_outputs     : (S, H)
    prepared            : prepare_attention_params(params)  (built once)
    w_enc               : optional precomputed encoder projection (built once per sequence)
    """
    s = prev_decoder_hidden[0][-1]                 # (1, H) last layer, batch=1
    return batched_attention_context(s, encoder_outputs, prepared,
                                     w_enc=w_enc, block_q=block_q)
    # TODO(synk): return_attention=True / attend() would add a second (B, S)
    # alphas output block to out_specs; omitted to keep the demo output lane-dense.


def _reference_forward(prev_decoder_hidden, encoder_outputs, params):
    """Pure-JAX reference mirroring the PyTorch code line by line."""
    s = prev_decoder_hidden[0][-1]                       # (1, H)
    h = encoder_outputs                                  # (S, H)
    u_ = s @ params["uA"].T                              # (1, H)
    w_ = h @ params["wA"].T                              # (S, H)
    tmp = jnp.tanh(u_ + w_)                              # (S, H)
    v = tmp @ params["vA"].T                             # (S, 1)
    es = v.T                                             # (1, S)
    alphas = jax.nn.softmax(es, axis=1)                  # (1, S)
    return alphas @ h                                    # (1, H)


def _reference_batched(s_rows, encoder_outputs, params):
    """Reference for a batch of independent query rows."""
    h = encoder_outputs                                  # (S, H)
    u_ = s_rows @ params["uA"].T                         # (B, H)
    w_ = h @ params["wA"].T                              # (S, H)
    tmp = jnp.tanh(u_[:, None, :] + w_[None, :, :])      # (B, S, H)
    e = jnp.einsum("bsh,h->bs", tmp, params["vA"][0])    # (B, S)
    alphas = jax.nn.softmax(e, axis=-1)                  # (B, S)
    return alphas @ h                                    # (B, H)


if __name__ == "__main__":
    H = 32          # hidden_size
    S = 8           # encoder sequence length
    NUM_LAYERS = 2  # decoder layers (only last layer is used)

    key = jax.random.PRNGKey(0)
    k_u, k_w, k_v, k_h, k_c, k_enc, k_b = jax.random.split(key, 7)

    # Deterministic "PyTorch-like" init: uniform(-1/sqrt(H), 1/sqrt(H)).
    bound = 1.0 / jnp.sqrt(jnp.float32(H))
    params = {
        "uA": jax.random.uniform(k_u, (H, H), jnp.float32, -bound, bound),
        "wA": jax.random.uniform(k_w, (H, H), jnp.float32, -bound, bound),
        "vA": jax.random.uniform(k_v, (1, H), jnp.float32, -bound, bound),
    }
    # Weight transposes hoisted out of the per-step call (done once here).
    prepared = prepare_attention_params(params)

    # prev_decoder_hidden = (h_state, c_state) from an LSTM decoder, batch = 1.
    h_state = jax.random.normal(k_h, (NUM_LAYERS, 1, H), jnp.float32)
    c_state = jax.random.normal(k_c, (NUM_LAYERS, 1, H), jnp.float32)
    encoder_outputs = jax.random.normal(k_enc, (S, H), jnp.float32)

    # Query-invariant encoder projection hoisted once per encoded sequence.
    w_enc = precompute_encoder_projection(encoder_outputs, prepared)

    # Faithful module forward (single query row).
    ctx = attention_forward((h_state, c_state), encoder_outputs, prepared, w_enc=w_enc)
    ctx = jax.block_until_ready(ctx)
    ref = _reference_forward((h_state, c_state), encoder_outputs, params)
    assert ctx.shape == (1, H)
    assert jnp.allclose(ctx, ref, atol=1e-5, rtol=1e-5), "mismatch vs reference"

    # Batched path: many independent decoder hidden states at once
    # (decode steps / beam), exercising the padded single-block path.
    B = 20
    s_rows = jax.random.normal(k_b, (B, H), jnp.float32)
    ctx_b = batched_attention_context(s_rows, encoder_outputs, prepared, w_enc=w_enc)
    ctx_b = jax.block_until_ready(ctx_b)
    ref_b = _reference_batched(s_rows, encoder_outputs, params)
    assert ctx_b.shape == (B, H)
    assert jnp.allclose(ctx_b, ref_b, atol=1e-5, rtol=1e-5), "batched mismatch vs reference"

    print("KERNEL_OK")
</pallas_src>

<mosaic_0001>
module attributes {stable_mosaic.version = 11 : i64} {
  func.func @kernel(%arg0: i32, %arg1: memref<16x32xf32, #tpu.memory_space<vmem>>, %arg2: memref<8x32xf32, #tpu.memory_space<vmem>>, %arg3: memref<1x32xf32, #tpu.memory_space<vmem>>, %arg4: memref<8x32xf32, #tpu.memory_space<vmem>>, %arg5: memref<16x32xf32, #tpu.memory_space<vmem>>, %arg6: memref<16x8xf32, #tpu.memory_space<vmem>>) attributes {dimension_semantics = [#tpu.dimension_semantics<parallel>], iteration_bounds = array<i64: 1>, scalar_prefetch = 0 : i64, scratch_operands = 1 : i64, tpu.core_type = #tpu.core_type<tc>, window_params = [{transform_indices = @transform_0, window_bounds = array<i64: 16, 32>}, {pipeline_mode = #tpu.pipeline_mode<synchronous>, transform_indices = @transform_1, window_bounds = array<i64: 8, 32>}, {pipeline_mode = #tpu.pipeline_mode<synchronous>, transform_indices = @transform_2, window_bounds = array<i64: 1, 32>}, {pipeline_mode = #tpu.pipeline_mode<synchronous>, transform_indices = @transform_3, window_bounds = array<i64: 8, 32>}, {transform_indices = @transform_4, window_bounds = array<i64: 16, 32>}]} {
    %c0 = arith.constant 0 : index
    %c0_0 = arith.constant 0 : index
    %0 = vector.load %arg1[%c0, %c0_0] : memref<16x32xf32, #tpu.memory_space<vmem>>, vector<16x32xf32>
    %c0_1 = arith.constant 0 : index
    %c0_2 = arith.constant 0 : index
    %1 = vector.load %arg3[%c0_1, %c0_2] : memref<1x32xf32, #tpu.memory_space<vmem>>, vector<1x32xf32>
    %2 = vector.shape_cast %1 : vector<1x32xf32> to vector<1x1x32xf32>
    %c0_3 = arith.constant 0 : index
    %c0_4 = arith.constant 0 : index
    %3 = vector.load %arg2[%c0_3, %c0_4] : memref<8x32xf32, #tpu.memory_space<vmem>>, vector<8x32xf32>
    %4 = vector.shape_cast %0 : vector<16x32xf32> to vector<16x1x32xf32>
    %5 = vector.shape_cast %3 : vector<8x32xf32> to vector<1x8x32xf32>
    %6 = vector.broadcast %4 : vector<16x1x32xf32> to vector<16x8x32xf32>
    %7 = vector.broadcast %5 : vector<1x8x32xf32> to vector<16x8x32xf32>
    %8 = arith.addf %6, %7 : vector<16x8x32xf32>
    %9 = math.tanh %8 : vector<16x8x32xf32>
    %10 = vector.broadcast %2 : vector<1x1x32xf32> to vector<16x8x32xf32>
    %11 = arith.mulf %9, %10 : vector<16x8x32xf32>
    %cst = arith.constant dense<0.000000e+00> : vector<16x8xf32>
    %12 = vector.multi_reduction <add>, %11, %cst [2] : vector<16x8x32xf32> to vector<16x8xf32>
    %c0_5 = arith.constant 0 : index
    %c0_6 = arith.constant 0 : index
    %13 = vector.load %arg6[%c0_5, %c0_6] : memref<16x8xf32, #tpu.memory_space<vmem>>, vector<16x8xf32>
    tpu.vector_store %arg6[%c0_5, %c0_6], %12 {strides = array<i32>} : memref<16x8xf32, #tpu.memory_space<vmem>>, vector<16x8xf32>,
    %c0_7 = arith.constant 0 : index
    %c0_8 = arith.constant 0 : index
    %14 = vector.load %arg6[%c0_7, %c0_8] : memref<16x8xf32, #tpu.memory_space<vmem>>, vector<16x8xf32>
    %cst_9 = arith.constant dense<0xFF800000> : vector<16xf32>
    %15 = vector.multi_reduction <maximumf>, %14, %cst_9 [1] : vector<16x8xf32> to vector<16xf32>
    %16 = vector.shape_cast %15 : vector<16xf32> to vector<16x1xf32>
    %17 = vector.broadcast %16 : vector<16x1xf32> to vector<16x8xf32>
    %18 = arith.subf %14, %17 : vector<16x8xf32>
    %19 = math.exp %18 : vector<16x8xf32>
    %cst_10 = arith.constant dense<0.000000e+00> : vector<16xf32>
    %20 = vector.multi_reduction <add>, %19, %cst_10 [1] : vector<16x8xf32> to vector<16xf32>
    %21 = vector.shape_cast %20 : vector<16xf32> to vector<16x1xf32>
    %22 = vector.broadcast %21 : vector<16x1xf32> to vector<16x8xf32>
    %23 = arith.divf %19, %22 : vector<16x8xf32>
    %c0_11 = arith.constant 0 : index
    %c0_12 = arith.constant 0 : index
    %24 = vector.load %arg4[%c0_11, %c0_12] : memref<8x32xf32, #tpu.memory_space<vmem>>, vector<8x32xf32>
    %cst_13 = arith.constant dense<0.000000e+00> : vector<16x32xf32>
    %25 = tpu.matmul %23, %24, %cst_13 {dimension_numbers = #tpu.dot_dimension_numbers<[1], [0], [0], [1], [0, 0, 1, 1], [], []>} : vector<16x8xf32>, vector<8x32xf32>, vector<16x32xf32> -> vector<16x32xf32>
    %c0_14 = arith.constant 0 : index
    %c0_15 = arith.constant 0 : index
    %26 = vector.load %arg5[%c0_14, %c0_15] : memref<16x32xf32, #tpu.memory_space<vmem>>, vector<16x32xf32>
    tpu.vector_store %arg5[%c0_14, %c0_15], %25 {strides = array<i32>} : memref<16x32xf32, #tpu.memory_space<vmem>>, vector<16x32xf32>,
    return
  }
  func.func @transform_0(%arg0: i32) -> (i32, i32) {
    %c0_i32 = arith.constant 0 : i32
    %c0_i32_0 = arith.constant 0 : i32
    return %arg0, %c0_i32 : i32, i32
  }
  func.func @transform_1(%arg0: i32) -> (i32, i32) {
    %c0_i32 = arith.constant 0 : i32
    %c0_i32_0 = arith.constant 0 : i32
    %c0_i32_1 = arith.constant 0 : i32
    return %c0_i32, %c0_i32_0 : i32, i32
  }
  func.func @transform_2(%arg0: i32) -> (i32, i32) {
    %c0_i32 = arith.constant 0 : i32
    %c0_i32_0 = arith.constant 0 : i32
    %c0_i32_1 = arith.constant 0 : i32
    return %c0_i32, %c0_i32_0 : i32, i32
  }
  func.func @transform_3(%arg0: i32) -> (i32, i32) {
    %c0_i32 = arith.constant 0 : i32
    %c0_i32_0 = arith.constant 0 : i32
    %c0_i32_1 = arith.constant 0 : i32
    return %c0_i32, %c0_i32_0 : i32, i32
  }
  func.func @transform_4(%arg0: i32) -> (i32, i32) {
    %c0_i32 = arith.constant 0 : i32
    %c0_i32_0 = arith.constant 0 : i32
    return %arg0, %c0_i32 : i32, i32
  }
}

</mosaic_0001>

<llo_original>
// kernel: tpu_custom_call.1
$region0: #{tpu_custom_call.1}
  #allocation0 [shape = 'u32[]', space=smem, size = 0x4, offset = 0x4, fixed_abs, tag = 'smem constant byte address 0x4 - core index']
  #allocation1 [shape = 'u32[144,128]{1,0:T(1,128)}', space=vmem, size = 0x12000, scoped, tag = 'internal scratch']
  #allocation2 [shape = 'f32[16,8]{1,0:T(8,128)}', space=vmem, size = 0x2000, scoped, tag = 'scratch operand']
  %s0 = inlined_call_operand.hbm [shape: f32[16,32], index: 0, kind: input, shape index: {}]
  %s1 = inlined_call_operand.hbm [shape: f32[8,32], index: 1, kind: input, shape index: {}]
  %s2 = inlined_call_operand.vmem [shape: f32[1,32], index: 2, kind: input, shape index: {}]
  %s3 = inlined_call_operand.vmem [shape: f32[8,32], index: 3, kind: input, shape index: {}]
  %s4 = inlined_call_operand.hbm [shape: f32[16,32], index: 4, kind: output, shape index: {}]
  %s5 = sld [smem:[#allocation0]]
  $region34: #{tpu_custom_call.1} parent=0
    _
  %s7 = ssub.s32 1, %s5
  %s8 = scalar_select 0, %s7, %s5
  $region1: #{tpu_custom_call.1} parent=0
    #allocation3 [shape = 'u8[8192]{0}', space=vmem, size = 0x2000, scoped, tag = 'input window, operand 0, single buffered']
    #allocation4 [shape = 's32[1]{0}', space=sflag, size = 0x4, scoped, tag = 'scoped memory for tpu_custom_call.1']
    #allocation5 [shape = 's32[1]{0}', space=sflag, size = 0x4, scoped, tag = 'scoped memory for tpu_custom_call.1']
    #allocation6 [shape = 'u8[4096]{0}', space=vmem, size = 0x1000, scoped, tag = 'input window, operand 1, single buffered']
    #allocation7 [shape = 's32[1]{0}', space=sflag, size = 0x4, scoped, tag = 'scoped memory for tpu_custom_call.1']
    #allocation8 [shape = 'u8[8192]{0}', space=vmem, size = 0x2000, scoped, tag = 'output window, operand 0, single buffered']
    %9 = vsyncpa [#allocation4], 0
    %10 = vsyncpa [#allocation7], 0
    %11 = vsyncpa [#allocation5], 0
    // Predicated region
    $region2: #{tpu_custom_call.1} parent=1 // pred_check
      _
    $region3: #{tpu_custom_call.1} parent=1 // pred_check_branch
      %13 = sbr.rel (0) target = $region5
    $region4: #{tpu_custom_call.1} parent=1 // pred_region
      %s15 = ssub.s32 256, 256
      %16 = vsyncadd [#allocation4], %s15
      %s17 = sshll.u32 [#allocation3], 4
      %s18 = int_to_ptr.vmem [resolvable:$true] %s17
      %23 = dma.hbm_to_vmem [thread:$0]  %s0, 256, %s18, [#allocation4], 128, 128, 8
    $region5: #{tpu_custom_call.1} parent=1 // pred_fallthru
      _
    // Predicated region
    $region6: #{tpu_custom_call.1} parent=1 // pred_check
      _
    $region7: #{tpu_custom_call.1} parent=1 // pred_check_branch
      %25 = sbr.rel (0) target = $region9
    $region8: #{tpu_custom_call.1} parent=1 // pred_region
      %s27 = ssub.s32 128, 128
      %28 = vsyncadd [#allocation7], %s27
      %s30 = sshll.u32 [#allocation6], 4
      %s31 = int_to_ptr.vmem [resolvable:$true] %s30
      %33 = dma.hbm_to_vmem [thread:$0]  %s1, 128, %s31, [#allocation7]
    $region9: #{tpu_custom_call.1} parent=1 // pred_fallthru
      _
    // Predicated region
    $region10: #{tpu_custom_call.1} parent=1 // pred_check
      _
    $region11: #{tpu_custom_call.1} parent=1 // pred_check_branch
      %35 = sbr.rel (0) target = $region13
    $region12: #{tpu_custom_call.1} parent=1 // pred_region
      _
    $region13: #{tpu_custom_call.1} parent=1 // pred_fallthru
      _
    // Predicated region
    $region14: #{tpu_custom_call.1} parent=1 // pred_check
      _
    $region15: #{tpu_custom_call.1} parent=1 // pred_check_branch
      %37 = sbr.rel (0) target = $region17
    $region16: #{tpu_custom_call.1} parent=1 // pred_region
      _
    $region17: #{tpu_custom_call.1} parent=1 // pred_fallthru
      _
    // Predicated region
    $region18: #{tpu_custom_call.1} parent=1 // pred_check
      _
    $region19: #{tpu_custom_call.1} parent=1 // pred_check_branch
      %39 = sbr.rel (0) target = $region21
    $region20: #{tpu_custom_call.1} parent=1 // pred_region
      %40 = dma.done [#allocation4], 256
    $region21: #{tpu_custom_call.1} parent=1 // pred_fallthru
      _
    // Predicated region
    $region22: #{tpu_custom_call.1} parent=1 // pred_check
      _
    $region23: #{tpu_custom_call.1} parent=1 // pred_check_branch
      %42 = sbr.rel (0) target = $region25
    $region24: #{tpu_custom_call.1} parent=1 // pred_region
      %43 = dma.done [#allocation7], 128
    $region25: #{tpu_custom_call.1} parent=1 // pred_fallthru
      _
    %v44 = vld [vmem:[#allocation3] sm:$0xff]
    %v45 = vld [vmem:[#allocation3 + $0x8] sm:$0xff]
    %v46 = vld [vmem:[%s2] sm:$0x1]
    %v47 = vld [vmem:[#allocation6] sm:$0xff]
    %v50 = vcombine.high %v44, %v44
    %v52 = vunpack.c.l.s4 1966171168
    %v53 = vunpack.c.0.s8 %v52
    %v54 = vlaneseq
    %v55 = vshrl.u32 %v54, 7
    %v56 = vsub.s32 %v53, %v55
    %v57 = vrot.slane %v44, %v56
    %v59 = vunpack.c.l.s4 1966171168
    %v60 = vunpack.c.0.s8 %v59
    %v61 = vlaneseq
    %v62 = vshrl.u32 %v61, 7
    %v63 = vsub.s32 %v60, %v62
    %v64 = vrot.slane %v50, %v63
    %v65 = vcombine.high %v57, %v57
    %v66 = vcombine.high %v64, %v64
    %v68 = vunpack.c.l.s4 1966171168
    %v69 = vunpack.c.0.s8 %v68
    %v70 = vlaneseq
    %v71 = vshrl.u32 %v70, 7
    %v72 = vsub.s32 %v69, %v71
    %v73 = vrot.slane %v57, %v72
    %v75 = vunpack.c.l.s4 1966171168
    %v76 = vunpack.c.0.s8 %v75
    %v77 = vlaneseq
    %v78 = vshrl.u32 %v77, 7
    %v79 = vsub.s32 %v76, %v78
    %v80 = vrot.slane %v64, %v79
    %v82 = vunpack.c.l.s4 1966171168
    %v83 = vunpack.c.0.s8 %v82
    %v84 = vlaneseq
    %v85 = vshrl.u32 %v84, 7
    %v86 = vsub.s32 %v83, %v85
    %v87 = vrot.slane %v65, %v86
    %v89 = vunpack.c.l.s4 1966171168
    %v90 = vunpack.c.0.s8 %v89
    %v91 = vlaneseq
    %v92 = vshrl.u32 %v91, 7
    %v93 = vsub.s32 %v90, %v92
    %v94 = vrot.slane %v66, %v93
    %v95 = vcombine.high %v73, %v73
    %v96 = vcombine.high %v80, %v80
    %v97 = vcombine.high %v87, %v87
    %v98 = vcombine.high %v94, %v94
    %v99 = vcombine.high %v45, %v45
    %v101 = vunpack.c.l.s4 1966171168
    %v102 = vunpack.c.0.s8 %v101
    %v103 = vlaneseq
    %v104 = vshrl.u32 %v103, 7
    %v105 = vsub.s32 %v102, %v104
    %v106 = vrot.slane %v45, %v105
    %v108 = vunpack.c.l.s4 1966171168
    %v109 = vunpack.c.0.s8 %v108
    %v110 = vlaneseq
    %v111 = vshrl.u32 %v110, 7
    %v112 = vsub.s32 %v109, %v111
    %v113 = vrot.slane %v99, %v112
    %v114 = vcombine.high %v106, %v106
    %v115 = vcombine.high %v113, %v113
    %v117 = vunpack.c.l.s4 1966171168
    %v118 = vunpack.c.0.s8 %v117
    %v119 = vlaneseq
    %v120 = vshrl.u32 %v119, 7
    %v121 = vsub.s32 %v118, %v120
    %v122 = vrot.slane %v106, %v121
    %v124 = vunpack.c.l.s4 1966171168
    %v125 = vunpack.c.0.s8 %v124
    %v126 = vlaneseq
    %v127 = vshrl.u32 %v126, 7
    %v128 = vsub.s32 %v125, %v127
    %v129 = vrot.slane %v113, %v128
    %v131 = vunpack.c.l.s4 1966171168
    %v132 = vunpack.c.0.s8 %v131
    %v133 = vlaneseq
    %v134 = vshrl.u32 %v133, 7
    %v135 = vsub.s32 %v132, %v134
    %v136 = vrot.slane %v114, %v135
    %v138 = vunpack.c.l.s4 1966171168
    %v139 = vunpack.c.0.s8 %v138
    %v140 = vlaneseq
    %v141 = vshrl.u32 %v140, 7
    %v142 = vsub.s32 %v139, %v141
    %v143 = vrot.slane %v115, %v142
    %v144 = vcombine.high %v122, %v122
    %v145 = vcombine.high %v129, %v129
    %v146 = vcombine.high %v136, %v136
    %v147 = vcombine.high %v143, %v143
    %v148 = vlaneseq
    %v149 = vshrl.u32 %v148, 7
    %v150 = vsub.s32 0, %v149
    %v151 = vrot.slane %v73, %v150
    %v152 = vlaneseq
    %v153 = vshrl.u32 %v152, 7
    %v154 = vsub.s32 0, %v153
    %v155 = vrot.slane %v87, %v154
    %v156 = vlaneseq
    %v157 = vshrl.u32 %v156, 7
    %v158 = vsub.s32 0, %v157
    %v159 = vrot.slane %v95, %v158
    %v160 = vlaneseq
    %v161 = vshrl.u32 %v160, 7
    %v162 = vsub.s32 0, %v161
    %v163 = vrot.slane %v97, %v162
    %v164 = vlaneseq
    %v165 = vshrl.u32 %v164, 7
    %v166 = vsub.s32 0, %v165
    %v167 = vrot.slane %v80, %v166
    %v168 = vlaneseq
    %v169 = vshrl.u32 %v168, 7
    %v170 = vsub.s32 0, %v169
    %v171 = vrot.slane %v94, %v170
    %v172 = vlaneseq
    %v173 = vshrl.u32 %v172, 7
    %v174 = vsub.s32 0, %v173
    %v175 = vrot.slane %v96, %v174
    %v176 = vlaneseq
    %v177 = vshrl.u32 %v176, 7
    %v178 = vsub.s32 0, %v177
    %v179 = vrot.slane %v98, %v178
    %v180 = vlaneseq
    %v181 = vshrl.u32 %v180, 7
    %v182 = vsub.s32 0, %v181
    %v183 = vrot.slane %v122, %v182
    %v184 = vlaneseq
    %v185 = vshrl.u32 %v184, 7
    %v186 = vsub.s32 0, %v185
    %v187 = vrot.slane %v136, %v186
    %v188 = vlaneseq
    %v189 = vshrl.u32 %v188, 7
    %v190 = vsub.s32 0, %v189
    %v191 = vrot.slane %v144, %v190
    %v192 = vlaneseq
    %v193 = vshrl.u32 %v192, 7
    %v194 = vsub.s32 0, %v193
    %v195 = vrot.slane %v146, %v194
    %v196 = vlaneseq
    %v197 = vshrl.u32 %v196, 7
    %v198 = vsub.s32 0, %v197
    %v199 = vrot.slane %v129, %v198
    %v200 = vlaneseq
    %v201 = vshrl.u32 %v200, 7
    %v202 = vsub.s32 0, %v201
    %v203 = vrot.slane %v143, %v202
    %v204 = vlaneseq
    %v205 = vshrl.u32 %v204, 7
    %v206 = vsub.s32 0, %v205
    %v207 = vrot.slane %v145, %v206
    %v208 = vlaneseq
    %v209 = vshrl.u32 %v208, 7
    %v210 = vsub.s32 0, %v209
    %v211 = vrot.slane %v147, %v210
    %v228 = vadd.f32 %v151, %v47
    %v229 = vadd.f32 %v155, %v47
    %v230 = vadd.f32 %v159, %v47
    %v231 = vadd.f32 %v163, %v47
    %v232 = vadd.f32 %v167, %v47
    %v233 = vadd.f32 %v171, %v47
    %v234 = vadd.f32 %v175, %v47
    %v235 = vadd.f32 %v179, %v47
    %v236 = vadd.f32 %v183, %v47
    %v237 = vadd.f32 %v187, %v47
    %v238 = vadd.f32 %v191, %v47
    %v239 = vadd.f32 %v195, %v47
    %v240 = vadd.f32 %v199, %v47
    %v241 = vadd.f32 %v203, %v47
    %v242 = vadd.f32 %v207, %v47
    %v243 = vadd.f32 %v211, %v47
    %v244 = vtanh.pop %v228
    %v245 = vtanh.pop %v229
    %v246 = vtanh.pop %v230
    %v247 = vtanh.pop %v231
    %v248 = vtanh.pop %v232
    %v249 = vtanh.pop %v233
    %v250 = vtanh.pop %v234
    %v251 = vtanh.pop %v235
    %v252 = vtanh.pop %v236
    %v253 = vtanh.pop %v237
    %v254 = vtanh.pop %v238
    %v255 = vtanh.pop %v239
    %v256 = vtanh.pop %v240
    %v257 = vtanh.pop %v241
    %v258 = vtanh.pop %v242
    %v259 = vtanh.pop %v243
    %v261 = vlaneseq
    %v262 = vshrl.u32 %v261, 7
    %v263 = vsub.s32 0, %v262
    %v264 = vrot.slane %v46, %v263
    %v266 = vmul.f32 %v244, %v264
    %v267 = vmul.f32 %v245, %v264
    %v268 = vmul.f32 %v246, %v264
    %v269 = vmul.f32 %v247, %v264
    %v270 = vmul.f32 %v248, %v264
    %v271 = vmul.f32 %v249, %v264
    %v272 = vmul.f32 %v250, %v264
    %v273 = vmul.f32 %v251, %v264
    %v274 = vmul.f32 %v252, %v264
    %v275 = vmul.f32 %v253, %v264
    %v276 = vmul.f32 %v254, %v264
    %v277 = vmul.f32 %v255, %v264
    %v278 = vmul.f32 %v256, %v264
    %v279 = vmul.f32 %v257, %v264
    %v280 = vmul.f32 %v258, %v264
    %v281 = vmul.f32 %v259, %v264
    %vm282 = vcmask 261120
    %v283 = vsel %vm282, %v266, 0.0
    %284 = vadd.xlane.f32.xlu0 %v283
    %v285 = vpop.xlane.xlu0 %284
    %v286 = vsel %vm282, %v267, 0.0
    %287 = vadd.xlane.f32.xlu0 %v286
    %v288 = vpop.xlane.xlu0 %287
    %v289 = vsel %vm282, %v268, 0.0
    %290 = vadd.xlane.f32.xlu0 %v289
    %v291 = vpop.xlane.xlu0 %290
    %v292 = vsel %vm282, %v269, 0.0
    %293 = vadd.xlane.f32.xlu0 %v292
    %v294 = vpop.xlane.xlu0 %293
    %v295 = vsel %vm282, %v270, 0.0
    %296 = vadd.xlane.f32.xlu0 %v295
    %v297 = vpop.xlane.xlu0 %296
    %v298 = vsel %vm282, %v271, 0.0
    %299 = vadd.xlane.f32.xlu0 %v298
    %v300 = vpop.xlane.xlu0 %299
    %v301 = vsel %vm282, %v272, 0.0
    %302 = vadd.xlane.f32.xlu0 %v301
    %v303 = vpop.xlane.xlu0 %302
    %v304 = vsel %vm282, %v273, 0.0
    %305 = vadd.xlane.f32.xlu0 %v304
    %v306 = vpop.xlane.xlu0 %305
    %v307 = vsel %vm282, %v274, 0.0
    %308 = vadd.xlane.f32.xlu0 %v307
    %v309 = vpop.xlane.xlu0 %308
    %v310 = vsel %vm282, %v275, 0.0
    %311 = vadd.xlane.f32.xlu0 %v310
    %v312 = vpop.xlane.xlu0 %311
    %v313 = vsel %vm282, %v276, 0.0
    %314 = vadd.xlane.f32.xlu0 %v313
    %v315 = vpop.xlane.xlu0 %314
    %v316 = vsel %vm282, %v277, 0.0
    %317 = vadd.xlane.f32.xlu0 %v316
    %v318 = vpop.xlane.xlu0 %317
    %v319 = vsel %vm282, %v278, 0.0
    %320 = vadd.xlane.f32.xlu0 %v319
    %v321 = vpop.xlane.xlu0 %320
    %v322 = vsel %vm282, %v279, 0.0
    %323 = vadd.xlane.f32.xlu0 %v322
    %v324 = vpop.xlane.xlu0 %323
    %v325 = vsel %vm282, %v280, 0.0
    %326 = vadd.xlane.f32.xlu0 %v325
    %v327 = vpop.xlane.xlu0 %326
    %v328 = vsel %vm282, %v281, 0.0
    %329 = vadd.xlane.f32.xlu0 %v328
    %v330 = vpop.xlane.xlu0 %329
    %v347 = vlaneseq
    %v348 = vand.u32 %v347, 127
    %v349 = vlaneseq
    %v350 = vshrl.u32 %v349, 7
    %v351 = vsub.s32 %v348, %v350
    %v352 = vrot.slane %v285, %v351
    %v353 = vlaneseq
    %v354 = vshrl.u32 %v353, 7
    %v355 = vsub.s32 %v348, %v354
    %v356 = vrot.slane %v288, %v355
    %v357 = vlaneseq
    %v358 = vshrl.u32 %v357, 7
    %v359 = vsub.s32 %v348, %v358
    %v360 = vrot.slane %v291, %v359
    %v361 = vlaneseq
    %v362 = vshrl.u32 %v361, 7
    %v363 = vsub.s32 %v348, %v362
    %v364 = vrot.slane %v294, %v363
    %v365 = vlaneseq
    %v366 = vshrl.u32 %v365, 7
    %v367 = vsub.s32 %v348, %v366
    %v368 = vrot.slane %v297, %v367
    %v369 = vlaneseq
    %v370 = vshrl.u32 %v369, 7
    %v371 = vsub.s32 %v348, %v370
    %v372 = vrot.slane %v300, %v371
    %v373 = vlaneseq
    %v374 = vshrl.u32 %v373, 7
    %v375 = vsub.s32 %v348, %v374
    %v376 = vrot.slane %v303, %v375
    %v377 = vlaneseq
    %v378 = vshrl.u32 %v377, 7
    %v379 = vsub.s32 %v348, %v378
    %v380 = vrot.slane %v306, %v379
    %v381 = vlaneseq
    %v382 = vshrl.u32 %v381, 7
    %v383 = vsub.s32 %v348, %v382
    %v384 = vrot.slane %v309, %v383
    %v385 = vlaneseq
    %v386 = vshrl.u32 %v385, 7
    %v387 = vsub.s32 %v348, %v386
    %v388 = vrot.slane %v312, %v387
    %v389 = vlaneseq
    %v390 = vshrl.u32 %v389, 7
    %v391 = vsub.s32 %v348, %v390
    %v392 = vrot.slane %v315, %v391
    %v393 = vlaneseq
    %v394 = vshrl.u32 %v393, 7
    %v395 = vsub.s32 %v348, %v394
    %v396 = vrot.slane %v318, %v395
    %v397 = vlaneseq
    %v398 = vshrl.u32 %v397, 7
    %v399 = vsub.s32 %v348, %v398
    %v400 = vrot.slane %v321, %v399
    %v401 = vlaneseq
    %v402 = vshrl.u32 %v401, 7
    %v403 = vsub.s32 %v348, %v402
    %v404 = vrot.slane %v324, %v403
    %v405 = vlaneseq
    %v406 = vshrl.u32 %v405, 7
    %v407 = vsub.s32 %v348, %v406
    %v408 = vrot.slane %v327, %v407
    %v409 = vlaneseq
    %v410 = vshrl.u32 %v409, 7
    %v411 = vsub.s32 %v348, %v410
    %v412 = vrot.slane %v330, %v411
    %vm413 = vcmask 1041409
    %v414 = vsel %vm413, %v356, %v352
    %vm415 = vcmask 1042434
    %v416 = vsel %vm415, %v360, %v414
    %vm417 = vcmask 1043459
    %v418 = vsel %vm417, %v364, %v416
    %vm419 = vcmask 1044484
    %v420 = vsel %vm419, %v368, %v418
    %vm421 = vcmask 1045509
    %v422 = vsel %vm421, %v372, %v420
    %vm423 = vcmask 1046534
    %v424 = vsel %vm423, %v376, %v422
    %vm425 = vcmask 1047559
    %v426 = vsel %vm425, %v380, %v424
    %v427 = vsel %vm413, %v388, %v384
    %v428 = vsel %vm415, %v392, %v427
    %v429 = vsel %vm417, %v396, %v428
    %v430 = vsel %vm419, %v400, %v429
    %v431 = vsel %vm421, %v404, %v430
    %v432 = vsel %vm423, %v408, %v431
    %v433 = vsel %vm425, %v412, %v432
    %vm436 = vcmask 64512
    %437 = vst.msk [vmem:[#allocation2] sm:$0xff] %vm436, %v426
    %438 = vst.msk [vmem:[#allocation2 + $0x8] sm:$0xff] %vm436, %v433
    %v439 = vld [vmem:[#allocation2] sm:$0xff]
    %v440 = vld [vmem:[#allocation2 + $0x8] sm:$0xff]
    %v441 = vsel %vm436, %v439, -inf
    %442 = vmax.xlane.f32.xlu0 %v441
    %v443 = vpop.xlane.xlu0 %442
    %v444 = vsel %vm436, %v440, -inf
    %445 = vmax.xlane.f32.xlu0 %v444
    %v446 = vpop.xlane.xlu0 %445
    %v447 = vsub.f32 %v439, %v443
    %v448 = vsub.f32 %v440, %v446
    %v449 = vmul.f32 %v447, 1.442695
    %v450 = vpow.pop %v449
    %v451 = vmul.f32 %v448, 1.442695
    %v452 = vpow.pop %v451
    %v453 = vsel %vm436, %v450, 0.0
    %454 = vadd.xlane.f32.xlu0 %v453
    %v455 = vpop.xlane.xlu0 %454
    %v456 = vsel %vm436, %v452, 0.0
    %457 = vadd.xlane.f32.xlu0 %v456
    %v458 = vpop.xlane.xlu0 %457
    %v459 = vrcp.pop %v455
    %v460 = vmul.f32 %v450, %v459
    %v461 = vrcp.pop %v458
    %v462 = vmul.f32 %v452, %v461
    %v463 = vld [vmem:[%s3] sm:$0xff]
    %v465 = vsel %vm436, %v460, 0
    %v468 = vsel %vm436, %v462, 0
    %470 = vmatprep.subr.mxu0 0.0
    %471 = vmatpush1.msra.mxu0 %v463
    %472 = vmatprep.subr.mxu0 0.0
    %473 = vmatpush1.msra.mxu0 0.0
    %474 = vmatprep.subr.mxu0 0.0
    %475 = vmatpush1.msra.mxu0 0.0
    %476 = vmatprep.subr.mxu0 0.0
    %477 = vmatpush1.msra.mxu0 0.0
    %478 = vmatprep.subr.mxu0 0.0
    %479 = vmatpush1.msra.mxu0 0.0
    %480 = vmatprep.subr.mxu0 0.0
    %481 = vmatpush1.msra.mxu0 0.0
    %482 = vmatprep.subr.mxu0 0.0
    %483 = vmatpush1.msra.mxu0 0.0
    %484 = vmatprep.subr.mxu0 0.0
    %485 = vmatpush1.msra.mxu0 0.0
    %486 = vmatprep.subr.mxu0 0.0
    %487 = vmatpush1.msra.mxu0 0.0
    %488 = vmatprep.subr.mxu0 0.0
    %489 = vmatpush1.msra.mxu0 0.0
    %490 = vmatprep.subr.mxu0 0.0
    %491 = vmatpush1.msra.mxu0 0.0
    %492 = vmatprep.subr.mxu0 0.0
    %493 = vmatpush1.msra.mxu0 0.0
    %494 = vmatprep.subr.mxu0 0.0
    %495 = vmatpush1.msra.mxu0 0.0
    %496 = vmatprep.subr.mxu0 0.0
    %497 = vmatpush1.msra.mxu0 0.0
    %498 = vmatprep.subr.mxu0 0.0
    %499 = vmatpush1.msra.mxu0 0.0
    %500 = vmatprep.subr.mxu0 0.0
    %501 = vmatpush1.msra.mxu0 0.0
    %502 = vmatprep.subr.mxu0 0.0
    %503 = vmatpush1.msra.mxu0 0.0
    %504 = vmatprep.subr.mxu0 0.0
    %505 = vmatpush1.msra.mxu0 0.0
    %506 = vmatprep.subr.mxu0 0.0
    %507 = vmatpush1.msra.mxu0 0.0
    %508 = vmatprep.subr.mxu0 0.0
    %509 = vmatpush1.msra.mxu0 0.0
    %510 = vmatprep.subr.mxu0 0.0
    %511 = vmatpush1.msra.mxu0 0.0
    %512 = vmatprep.subr.mxu0 0.0
    %513 = vmatpush1.msra.mxu0 0.0
    %514 = vmatprep.subr.mxu0 0.0
    %515 = vmatpush1.msra.mxu0 0.0
    %516 = vmatprep.subr.mxu0 0.0
    %517 = vmatpush1.msra.mxu0 0.0
    %518 = vmatprep.subr.mxu0 0.0
    %519 = vmatpush1.msra.mxu0 0.0
    %520 = vmatprep.subr.mxu0 0.0
    %521 = vmatpush1.msra.mxu0 0.0
    %522 = vmatprep.subr.mxu0 0.0
    %523 = vmatpush1.msra.mxu0 0.0
    %524 = vmatprep.subr.mxu0 0.0
    %525 = vmatpush1.msra.mxu0 0.0
    %526 = vmatprep.subr.mxu0 0.0
    %527 = vmatpush1.msra.mxu0 0.0
    %528 = vmatprep.subr.mxu0 0.0
    %529 = vmatpush1.msra.mxu0 0.0
    %530 = vmatprep.subr.mxu0 0.0
    %531 = vmatpush1.msra.mxu0 0.0
    %532 = vmatprep.subr.mxu0 0.0
    %533 = vmatpush1.msra.mxu0 0.0
    %534 = vmatprep.mubr.f32.mxu0 0.0
    %535 = vmatmul.mubr.f32.gmra.mrb[0].mxu0 %v465
    %v536 = vpop.f32.mrb[0].mxu0
    %v537 = vadd.f32 0.0, %v536
    %v538 = vpop.f32.mrb[0].mxu0
    %539 = vmatprep.mubr.f32.mxu0 0.0
    %540 = vmatmul.mubr.f32.gmra.mrb[0].mxu0 %v468
    %v541 = vpop.f32.mrb[0].mxu0
    %v542 = vadd.f32 0.0, %v541
    %v543 = vpop.f32.mrb[0].mxu0
    %544 = vdwg.mxu0
    %545 = vst.msk [vmem:[#allocation8] sm:$0xff] %vm282, %v537
    %546 = vst.msk [vmem:[#allocation8 + $0x8] sm:$0xff] %vm282, %v542
    // Predicated region
    $region26: #{tpu_custom_call.1} parent=1 // pred_check
      _
    $region27: #{tpu_custom_call.1} parent=1 // pred_check_branch
      %548 = sbr.rel (0) target = $region29
    $region28: #{tpu_custom_call.1} parent=1 // pred_region
      %s550 = ssub.s32 256, 256
      %551 = vsyncadd [#allocation5], %s550
      %s552 = sshll.u32 [#allocation8], 4
      %s553 = int_to_ptr.vmem [resolvable:$true] %s552
      %558 = dma.vmem_to_hbm [thread:$0]  %s553, 256, %s4, [#allocation5], 128, 128, 8
    $region29: #{tpu_custom_call.1} parent=1 // pred_fallthru
      _
    // Predicated region
    $region30: #{tpu_custom_call.1} parent=1 // pred_check
      _
    $region31: #{tpu_custom_call.1} parent=1 // pred_check_branch
      %560 = sbr.rel (0) target = $region33
    $region32: #{tpu_custom_call.1} parent=1 // pred_region
      %561 = dma.done [#allocation5], 256
    $region33: #{tpu_custom_call.1} parent=1 // pred_fallthru
      _
    %562 = vsyncpa [#allocation4], 1
    %563 = vsyncpa [#allocation7], 1
    %564 = vsyncpa [#allocation5], 1

</llo_original>
